<compile_context>
chip_gen: v7x
topology: tpu7x:2x2x1
jax: 0.10.0
libtpu: 0.0.40
codegen_flags: <defaults>
</compile_context>

<pallas_src>
import jax
import jax.numpy as jnp
from jax.experimental import pallas as pl
from jax.experimental.pallas import tpu as pltpu

_SQRT2 = 1.4142135623730951
_PAD_HALF_NORM = 1e30      # half-squared-norm fill for padded columns
_NO_NEG_THRESH = 1e29      # "no real negative found" detection threshold


def _make_triplet_kernel(margin):
    soft = isinstance(margin, str) and margin == "soft"

    def kernel(xt_ref, xct_ref, hr_ref, hc_ref, tcol_ref, trow_ref,
               out_ref, p_sc, n_sc, f_sc):
        i = pl.program_id(0)          # row-tile index ("parallel")
        j = pl.program_id(1)          # column-tile index ("arbitrary", innermost)

        # MXU: Gram block g[a,b] = <x_row_tile[a], x_col_tile[b]>, canonical (M,K)x(K,N).
        g = jax.lax.dot_general(
            xt_ref[...], xct_ref[...],
            dimension_numbers=(((1,), (0,)), ((), ())),
            preferred_element_type=jnp.float32,
        )                                                      # (TM, TN) f32

        # Half squared distances: h = |xi|^2/2 + |xj|^2/2 - <xi,xj>, clamped >= 0.
        h = jnp.maximum(hr_ref[...] + hc_ref[...] - g, 0.0)     # (TM, TN)
        tm, tn = h.shape

        same = tcol_ref[...] == trow_ref[...]                   # (TM, TN)

        # Diagonal exclusion with a single (TM,TN) iota:
        # global row == global col  <=>  local_col == local_row + (i*TM - j*TN).
        row_idx = jax.lax.broadcasted_iota(jnp.int32, (tm, 1), 0) + (i * tm - j * tn)
        col_idx = jax.lax.broadcasted_iota(jnp.int32, (tm, tn), 1)
        not_diag = col_idx != row_idx

        # Hardest positive (torch 0-fills via dist*mask_pos; sqrt is monotone so we
        # mine on half-squared distances) and nearest negative.
        p_blk = jnp.max(jnp.where(jnp.logical_and(same, not_diag), h, 0.0),
                        axis=1, keepdims=True)                  # (TM, 1)
        n_blk = jnp.min(jnp.where(same, jnp.float32(jnp.inf), h),
                        axis=1, keepdims=True)                  # (TM, 1)

        @pl.when(j == 0)
        def _init():
            p_sc[...] = jnp.zeros_like(p_sc)
            n_sc[...] = jnp.full_like(n_sc, jnp.inf)
            # torch fallback when a row has no negatives: dist.gather picks dist[0, j].
            f_sc[...] = h[:, 0:1]

        p_sc[...] = jnp.maximum(p_sc[...], p_blk)
        n_sc[...] = jnp.minimum(n_sc[...], n_blk)

        @pl.when(j == pl.num_programs(1) - 1)
        def _finalize():
            nh = n_sc[...]
            nh = jnp.where(nh >= jnp.float32(_NO_NEG_THRESH), f_sc[...], nh)
            diff = jnp.float32(_SQRT2) * (jnp.sqrt(p_sc[...]) - jnp.sqrt(nh))
            if soft:
                # Numerically stable softplus (matches F.softplus), f32.
                diff = jnp.maximum(diff, 0.0) + jnp.log1p(jnp.exp(-jnp.abs(diff)))
            else:
                diff = jnp.maximum(diff + jnp.float32(margin), 0.0)
            out_ref[...] = diff                                  # (TM, 1)

    return kernel


def _pick_block_rows(n):
    if n <= 512:
        return n            # single row tile (block == full dim is always legal)
    return 256              # MXU-friendly tile for v6e/v7x (multiple of 128 for v5e)


def _pick_block_cols(n_pad, d_feat, itemsize, block_rows):
    budget = 24 * 1024 * 1024
    for tn in (n_pad, 4096, 2048, 1024, 512, 256, 128):
        if tn > n_pad or n_pad % tn:
            continue
        if tn != n_pad and tn % 128:
            continue
        est = (2 * d_feat * tn * itemsize + 6 * block_rows * tn * 4
               + 2 * block_rows * d_feat * itemsize)
        if est <= budget:
            return tn
    return 128 if n_pad % 128 == 0 else n_pad


def _vmem_limit_bytes(est_bytes):
    try:
        cap = int(pltpu.get_tpu_info().vmem_capacity_bytes)
    except Exception:
        cap = 64 * 1024 * 1024          # conservative fallback (v7x-sized)
    want = max(2 * est_bytes, 32 * 1024 * 1024)
    return int(min(want, (cap * 85) // 100))


def triplet_loss(inputs, targets, margin="soft", block_rows=None, block_cols=None,
                 mxu_dtype=None):
    """Pallas equivalent of TripletLoss(margin, sample=False).forward(inputs, targets)."""
    # TODO(synk): sample=True branch (torch.multinomial stochastic mining) not implemented.
    n, d_feat = inputs.shape
    if block_rows is None:
        block_rows = _pick_block_rows(n)
    n_pad = -(-n // block_rows) * block_rows

    x32 = inputs.astype(jnp.float32)
    half_sq = 0.5 * jnp.sum(x32 * x32, axis=1)                  # (n,) f32
    t = targets.astype(jnp.int32).reshape(n)

    # Optionally run the Gram matmul in bf16 (MXU-native); norms/epilogue stay f32.
    x_mm = inputs if mxu_dtype is None else inputs.astype(mxu_dtype)
    itemsize = jnp.dtype(x_mm.dtype).itemsize

    if block_cols is None:
        block_cols = _pick_block_cols(n_pad, d_feat, itemsize, block_rows)
    assert n_pad % block_rows == 0 and n_pad % block_cols == 0, (n, block_rows, block_cols)
    assert block_rows % 8 == 0 or block_rows == n_pad, (n, block_rows)
    assert block_cols % 128 == 0 or block_cols == n_pad, (n, block_cols)
    n_row_tiles = n_pad // block_rows
    n_col_tiles = n_pad // block_cols

    if n_pad != n:
        pad = n_pad - n
        x_mm = jnp.pad(x_mm, ((0, pad), (0, 0)))
        # Padded columns: huge half-norm (never the nearest negative) and a sentinel
        # label below every real class id (never a positive).  Padded row outputs are
        # finite garbage and are sliced off before the mean.
        half_sq = jnp.concatenate(
            [half_sq, jnp.full((pad,), _PAD_HALF_NORM, jnp.float32)])
        sentinel = jnp.min(t) - 1
        t = jnp.concatenate([t, jnp.broadcast_to(sentinel, (pad,))])

    x_t = x_mm.T                                   # (D, n_pad), lane-dense RHS
    hr = half_sq.reshape(n_pad, 1)
    hc = half_sq.reshape(1, n_pad)
    t_col = t.reshape(n_pad, 1)
    t_row = t.reshape(1, n_pad)

    est_bytes = (2 * block_rows * d_feat * itemsize          # row tile (double buffered)
                 + 2 * d_feat * block_cols * itemsize        # x^T column tile
                 + 6 * block_rows * block_cols * 4           # (TM, TN) f32 temporaries
                 + 8 * (block_rows + block_cols) * 4
                 + 4 * block_rows * 4)
    vmem_limit = _vmem_limit_bytes(est_bytes)

    cost = pl.CostEstimate(
        flops=2 * n_pad * n_pad * d_feat,
        transcendentals=4 * n_pad,
        bytes_accessed=int((n_row_tiles + 1) * n_pad * d_feat * itemsize
                           + 2 * (n_row_tiles + 1) * n_pad * 4 + n_pad * 4),
    )

    kernel = _make_triplet_kernel(margin)
    out = pl.pallas_call(
        kernel,
        out_shape=jax.ShapeDtypeStruct((n_pad, 1), jnp.float32),
        grid_spec=pltpu.PrefetchScalarGridSpec(
            num_scalar_prefetch=0,
            grid=(n_row_tiles, n_col_tiles),
            in_specs=[
                pl.BlockSpec((block_rows, d_feat), lambda i, j: (i, 0)),   # x row tile
                pl.BlockSpec((d_feat, block_cols), lambda i, j: (0, j)),   # x^T col tile
                pl.BlockSpec((block_rows, 1), lambda i, j: (i, 0)),        # half |x|^2 (rows)
                pl.BlockSpec((1, block_cols), lambda i, j: (0, j)),        # half |x|^2 (cols)
                pl.BlockSpec((block_rows, 1), lambda i, j: (i, 0)),        # labels (rows)
                pl.BlockSpec((1, block_cols), lambda i, j: (0, j)),        # labels (cols)
            ],
            out_specs=pl.BlockSpec((block_rows, 1), lambda i, j: (i, 0)),
            scratch_shapes=[pltpu.VMEM((block_rows, 1), jnp.float32)] * 3,
        ),
        compiler_params=pltpu.CompilerParams(
            # Row tiles are independent -> "parallel" (2nd TC on v7x); the column
            # axis carries the running max/min scratch -> "arbitrary".
            dimension_semantics=("parallel", "arbitrary"),
            vmem_limit_bytes=vmem_limit,
        ),
        cost_estimate=cost,
    )(x_mm, x_t, hr, hc, t_col, t_row)

    return jnp.sum(out[:n, 0]) / jnp.float32(n)


def _triplet_loss_ref(inputs, targets, margin="soft"):
    """Pure-JAX reference mirroring the PyTorch forward (sample=False)."""
    x = inputs.astype(jnp.float32)
    n = x.shape[0]
    dist = jnp.linalg.norm(x[:, None, :] - x[None, :, :], axis=2)
    same = targets[:, None] == targets[None, :]
    mask_pos = same & ~jnp.eye(n, dtype=bool)
    mask_neg = ~same
    dist_p = jnp.max(dist * mask_pos.astype(jnp.float32), axis=1)
    nindex = jnp.argmax(jnp.where(mask_neg, -dist, -jnp.inf), axis=1)
    dist_n = dist[nindex, jnp.arange(n)]        # dist.gather(0, nindex)
    d = dist_p - dist_n
    if isinstance(margin, str) and margin == "soft":
        d = jax.nn.softplus(d)
    else:
        d = jnp.maximum(d + margin, 0.0)
    return jnp.mean(d)


if __name__ == "__main__":
    key = jax.random.PRNGKey(0)
    k1, k2, k3, k4, k5, k6 = jax.random.split(key, 6)

    # Case 1: single row/column tile.
    n, d = 8, 32
    x1 = jax.random.normal(k1, (n, d), dtype=jnp.float32)
    t1 = jax.random.randint(k2, (n,), 0, 3, dtype=jnp.int32)
    l1 = jax.block_until_ready(triplet_loss(x1, t1, margin="soft"))
    r1 = _triplet_loss_ref(x1, t1, margin="soft")
    assert jnp.allclose(l1, r1, rtol=2e-3, atol=2e-3), (l1, r1)

    # Case 2: multiple row tiles ("parallel" axis), soft and hard margins.
    x2 = jax.random.normal(k3, (24, 32), dtype=jnp.float32)
    t2 = jax.random.randint(k4, (24,), 0, 4, dtype=jnp.int32)
    l2 = jax.block_until_ready(triplet_loss(x2, t2, margin="soft", block_rows=8))
    r2 = _triplet_loss_ref(x2, t2, margin="soft")
    assert jnp.allclose(l2, r2, rtol=2e-3, atol=2e-3), (l2, r2)

    l2m = jax.block_until_ready(triplet_loss(x2, t2, margin=0.3, block_rows=8))
    r2m = _triplet_loss_ref(x2, t2, margin=0.3)
    assert jnp.allclose(l2m, r2m, rtol=2e-3, atol=2e-3), (l2m, r2m)

    # Case 3: irregular N (row padding) + column-tiled reduction (scratch carry over j).
    x3 = jax.random.normal(k5, (300, 64), dtype=jnp.float32)
    t3 = jax.random.randint(k6, (300,), 0, 5, dtype=jnp.int32)
    l3 = jax.block_until_ready(
        triplet_loss(x3, t3, margin="soft", block_rows=128, block_cols=128))
    r3 = _triplet_loss_ref(x3, t3, margin="soft")
    assert jnp.allclose(l3, r3, rtol=2e-3, atol=2e-3), (l3, r3)

    # Case 4: degenerate batch with no negatives -> torch falls back to dist[0, j].
    x4 = jax.random.normal(k1, (8, 16), dtype=jnp.float32)
    t4 = jnp.zeros((8,), dtype=jnp.int32)
    l4 = jax.block_until_ready(triplet_loss(x4, t4, margin="soft"))
    r4 = _triplet_loss_ref(x4, t4, margin="soft")
    assert jnp.allclose(l4, r4, rtol=2e-3, atol=2e-3), (l4, r4)

    print("KERNEL_OK")
</pallas_src>

<mosaic_0001>
module attributes {stable_mosaic.version = 11 : i64} {
  func.func @kernel(%arg0: i32, %arg1: i32, %arg2: memref<8x32xf32, #tpu.memory_space<vmem>>, %arg3: memref<32x8xf32, #tpu.memory_space<vmem>>, %arg4: memref<8x1xf32, #tpu.memory_space<vmem>>, %arg5: memref<1x8xf32, #tpu.memory_space<vmem>>, %arg6: memref<8x1xi32, #tpu.memory_space<vmem>>, %arg7: memref<1x8xi32, #tpu.memory_space<vmem>>, %arg8: memref<8x1xf32, #tpu.memory_space<vmem>>, %arg9: memref<8x1xf32, #tpu.memory_space<vmem>>, %arg10: memref<8x1xf32, #tpu.memory_space<vmem>>, %arg11: memref<8x1xf32, #tpu.memory_space<vmem>>) attributes {dimension_semantics = [#tpu.dimension_semantics<parallel>, #tpu.dimension_semantics<arbitrary>], iteration_bounds = array<i64: 1, 1>, scalar_prefetch = 0 : i64, scratch_operands = 3 : i64, tpu.core_type = #tpu.core_type<tc>, window_params = [{transform_indices = @transform_0, window_bounds = array<i64: 8, 32>}, {transform_indices = @transform_1, window_bounds = array<i64: 32, 8>}, {transform_indices = @transform_2, window_bounds = array<i64: 8, 1>}, {transform_indices = @transform_3, window_bounds = array<i64: 1, 8>}, {transform_indices = @transform_4, window_bounds = array<i64: 8, 1>}, {transform_indices = @transform_5, window_bounds = array<i64: 1, 8>}, {transform_indices = @transform_6, window_bounds = array<i64: 8, 1>}]} {
    %c0 = arith.constant 0 : index
    %c0_0 = arith.constant 0 : index
    %0 = vector.load %arg2[%c0, %c0_0] : memref<8x32xf32, #tpu.memory_space<vmem>>, vector<8x32xf32>
    %c0_1 = arith.constant 0 : index
    %c0_2 = arith.constant 0 : index
    %1 = vector.load %arg3[%c0_1, %c0_2] : memref<32x8xf32, #tpu.memory_space<vmem>>, vector<32x8xf32>
    %cst = arith.constant dense<0.000000e+00> : vector<8x8xf32>
    %2 = tpu.matmul %0, %1, %cst {dimension_numbers = #tpu.dot_dimension_numbers<[1], [0], [0], [1], [0, 0, 1, 1], [], []>} : vector<8x32xf32>, vector<32x8xf32>, vector<8x8xf32> -> vector<8x8xf32>
    %c0_3 = arith.constant 0 : index
    %c0_4 = arith.constant 0 : index
    %3 = vector.load %arg4[%c0_3, %c0_4] : memref<8x1xf32, #tpu.memory_space<vmem>>, vector<8x1xf32>
    %c0_5 = arith.constant 0 : index
    %c0_6 = arith.constant 0 : index
    %4 = vector.load %arg5[%c0_5, %c0_6] : memref<1x8xf32, #tpu.memory_space<vmem>>, vector<1x8xf32>
    %5 = vector.broadcast %3 : vector<8x1xf32> to vector<8x8xf32>
    %6 = vector.broadcast %4 : vector<1x8xf32> to vector<8x8xf32>
    %7 = arith.addf %5, %6 : vector<8x8xf32>
    %8 = arith.subf %7, %2 : vector<8x8xf32>
    %cst_7 = arith.constant 0.000000e+00 : f32
    %9 = vector.broadcast %cst_7 : f32 to vector<8x8xf32>
    %10 = arith.maximumf %8, %9 : vector<8x8xf32>
    %c0_8 = arith.constant 0 : index
    %c0_9 = arith.constant 0 : index
    %11 = vector.load %arg6[%c0_8, %c0_9] : memref<8x1xi32, #tpu.memory_space<vmem>>, vector<8x1xi32>
    %c0_10 = arith.constant 0 : index
    %c0_11 = arith.constant 0 : index
    %12 = vector.load %arg7[%c0_10, %c0_11] : memref<1x8xi32, #tpu.memory_space<vmem>>, vector<1x8xi32>
    %13 = vector.broadcast %11 : vector<8x1xi32> to vector<8x8xi32>
    %14 = vector.broadcast %12 : vector<1x8xi32> to vector<8x8xi32>
    %15 = arith.cmpi eq, %13, %14 : vector<8x8xi32>
    %16 = tpu.iota {dimensions = array<i32: 0>} : vector<8x1xi32>
    %c8_i32 = arith.constant 8 : i32
    %17 = arith.muli %arg0, %c8_i32 : i32
    %c8_i32_12 = arith.constant 8 : i32
    %18 = arith.muli %arg1, %c8_i32_12 : i32
    %19 = arith.subi %17, %18 : i32
    %20 = vector.broadcast %19 : i32 to vector<8x1xi32>
    %21 = arith.addi %16, %20 : vector<8x1xi32>
    %22 = tpu.iota {dimensions = array<i32: 1>} : vector<8x8xi32>
    %23 = vector.broadcast %21 : vector<8x1xi32> to vector<8x8xi32>
    %24 = arith.cmpi ne, %22, %23 : vector<8x8xi32>
    %25 = arith.andi %15, %24 : vector<8x8xi1>
    %cst_13 = arith.constant 0.000000e+00 : f32
    %26 = vector.broadcast %cst_13 : f32 to vector<8x8xf32>
    %27 = arith.select %25, %10, %26 : vector<8x8xi1>, vector<8x8xf32>
    %cst_14 = arith.constant dense<0xFF800000> : vector<8xf32>
    %28 = vector.multi_reduction <maximumf>, %27, %cst_14 [1] : vector<8x8xf32> to vector<8xf32>
    %29 = vector.shape_cast %28 : vector<8xf32> to vector<8x1xf32>
    %cst_15 = arith.constant 0x7F800000 : f32
    %30 = vector.broadcast %cst_15 : f32 to vector<8x8xf32>
    %31 = arith.select %15, %30, %10 : vector<8x8xi1>, vector<8x8xf32>
    %cst_16 = arith.constant dense<0x7F800000> : vector<8xf32>
    %32 = vector.multi_reduction <minimumf>, %31, %cst_16 [1] : vector<8x8xf32> to vector<8xf32>
    %33 = vector.shape_cast %32 : vector<8xf32> to vector<8x1xf32>
    %c0_i32 = arith.constant 0 : i32
    %34 = arith.cmpi eq, %arg1, %c0_i32 : i32
    %35 = arith.extui %34 : i1 to i32
    %c0_i32_17 = arith.constant 0 : i32
    %36 = arith.cmpi ne, %35, %c0_i32_17 : i32
    scf.if %36 {
      %cst_28 = arith.constant 0.000000e+00 : f32
      %46 = vector.broadcast %cst_28 : f32 to vector<8x1xf32>
      %c0_29 = arith.constant 0 : index
      %c0_30 = arith.constant 0 : index
      %47 = vector.load %arg9[%c0_29, %c0_30] : memref<8x1xf32, #tpu.memory_space<vmem>>, vector<8x1xf32>
      tpu.vector_store %arg9[%c0_29, %c0_30], %46 {strides = array<i32>} : memref<8x1xf32, #tpu.memory_space<vmem>>, vector<8x1xf32>,
      %cst_31 = arith.constant 0x7F800000 : f32
      %48 = vector.broadcast %cst_31 : f32 to vector<8x1xf32>
      %c0_32 = arith.constant 0 : index
      %c0_33 = arith.constant 0 : index
      %49 = vector.load %arg10[%c0_32, %c0_33] : memref<8x1xf32, #tpu.memory_space<vmem>>, vector<8x1xf32>
      tpu.vector_store %arg10[%c0_32, %c0_33], %48 {strides = array<i32>} : memref<8x1xf32, #tpu.memory_space<vmem>>, vector<8x1xf32>,
      %50 = vector.extract_strided_slice %10 {offsets = [0, 0], sizes = [8, 1], strides = [1, 1]} : vector<8x8xf32> to vector<8x1xf32>
      %c0_34 = arith.constant 0 : index
      %c0_35 = arith.constant 0 : index
      %51 = vector.load %arg11[%c0_34, %c0_35] : memref<8x1xf32, #tpu.memory_space<vmem>>, vector<8x1xf32>
      tpu.vector_store %arg11[%c0_34, %c0_35], %50 {strides = array<i32>} : memref<8x1xf32, #tpu.memory_space<vmem>>, vector<8x1xf32>,
    } else {
    }
    %c0_18 = arith.constant 0 : index
    %c0_19 = arith.constant 0 : index
    %37 = vector.load %arg9[%c0_18, %c0_19] : memref<8x1xf32, #tpu.memory_space<vmem>>, vector<8x1xf32>
    %38 = arith.maximumf %37, %29 : vector<8x1xf32>
    %c0_20 = arith.constant 0 : index
    %c0_21 = arith.constant 0 : index
    %39 = vector.load %arg9[%c0_20, %c0_21] : memref<8x1xf32, #tpu.memory_space<vmem>>, vector<8x1xf32>
    tpu.vector_store %arg9[%c0_20, %c0_21], %38 {strides = array<i32>} : memref<8x1xf32, #tpu.memory_space<vmem>>, vector<8x1xf32>,
    %c0_22 = arith.constant 0 : index
    %c0_23 = arith.constant 0 : index
    %40 = vector.load %arg10[%c0_22, %c0_23] : memref<8x1xf32, #tpu.memory_space<vmem>>, vector<8x1xf32>
    %41 = arith.minimumf %40, %33 : vector<8x1xf32>
    %c0_24 = arith.constant 0 : index
    %c0_25 = arith.constant 0 : index
    %42 = vector.load %arg10[%c0_24, %c0_25] : memref<8x1xf32, #tpu.memory_space<vmem>>, vector<8x1xf32>
    tpu.vector_store %arg10[%c0_24, %c0_25], %41 {strides = array<i32>} : memref<8x1xf32, #tpu.memory_space<vmem>>, vector<8x1xf32>,
    %c0_i32_26 = arith.constant 0 : i32
    %43 = arith.cmpi eq, %arg1, %c0_i32_26 : i32
    %44 = arith.extui %43 : i1 to i32
    %c0_i32_27 = arith.constant 0 : i32
    %45 = arith.cmpi ne, %44, %c0_i32_27 : i32
    scf.if %45 {
      %c0_28 = arith.constant 0 : index
      %c0_29 = arith.constant 0 : index
      %46 = vector.load %arg10[%c0_28, %c0_29] : memref<8x1xf32, #tpu.memory_space<vmem>>, vector<8x1xf32>
      %cst_30 = arith.constant 1.000000e+29 : f32
      %47 = vector.broadcast %cst_30 : f32 to vector<8x1xf32>
      %48 = arith.cmpf oge, %46, %47 : vector<8x1xf32>
      %c0_31 = arith.constant 0 : index
      %c0_32 = arith.constant 0 : index
      %49 = vector.load %arg11[%c0_31, %c0_32] : memref<8x1xf32, #tpu.memory_space<vmem>>, vector<8x1xf32>
      %50 = arith.select %48, %49, %46 : vector<8x1xi1>, vector<8x1xf32>
      %c0_33 = arith.constant 0 : index
      %c0_34 = arith.constant 0 : index
      %51 = vector.load %arg9[%c0_33, %c0_34] : memref<8x1xf32, #tpu.memory_space<vmem>>, vector<8x1xf32>
      %52 = math.sqrt %51 : vector<8x1xf32>
      %53 = math.sqrt %50 : vector<8x1xf32>
      %54 = arith.subf %52, %53 : vector<8x1xf32>
      %cst_35 = arith.constant 1.41421354 : f32
      %55 = vector.broadcast %cst_35 : f32 to vector<8x1xf32>
      %56 = arith.mulf %55, %54 : vector<8x1xf32>
      %cst_36 = arith.constant 0.000000e+00 : f32
      %57 = vector.broadcast %cst_36 : f32 to vector<8x1xf32>
      %58 = arith.maximumf %56, %57 : vector<8x1xf32>
      %59 = math.absf %56 : vector<8x1xf32>
      %cst_37 = arith.constant 0.000000e+00 : f32
      %60 = vector.broadcast %cst_37 : f32 to vector<8x1xf32>
      %61 = arith.subf %60, %59 : vector<8x1xf32>
      %62 = math.exp %61 : vector<8x1xf32>
      %63 = math.log1p %62 : vector<8x1xf32>
      %64 = arith.addf %58, %63 : vector<8x1xf32>
      %c0_38 = arith.constant 0 : index
      %c0_39 = arith.constant 0 : index
      %65 = vector.load %arg8[%c0_38, %c0_39] : memref<8x1xf32, #tpu.memory_space<vmem>>, vector<8x1xf32>
      tpu.vector_store %arg8[%c0_38, %c0_39], %64 {strides = array<i32>} : memref<8x1xf32, #tpu.memory_space<vmem>>, vector<8x1xf32>,
    } else {
    }
    return
  }
  func.func @transform_0(%arg0: i32, %arg1: i32) -> (i32, i32) {
    %c0_i32 = arith.constant 0 : i32
    %c0_i32_0 = arith.constant 0 : i32
    return %arg0, %c0_i32 : i32, i32
  }
  func.func @transform_1(%arg0: i32, %arg1: i32) -> (i32, i32) {
    %c0_i32 = arith.constant 0 : i32
    %c0_i32_0 = arith.constant 0 : i32
    return %c0_i32, %arg1 : i32, i32
  }
  func.func @transform_2(%arg0: i32, %arg1: i32) -> (i32, i32) {
    %c0_i32 = arith.constant 0 : i32
    %c0_i32_0 = arith.constant 0 : i32
    return %arg0, %c0_i32 : i32, i32
  }
  func.func @transform_3(%arg0: i32, %arg1: i32) -> (i32, i32) {
    %c0_i32 = arith.constant 0 : i32
    %c0_i32_0 = arith.constant 0 : i32
    return %c0_i32, %arg1 : i32, i32
  }
  func.func @transform_4(%arg0: i32, %arg1: i32) -> (i32, i32) {
    %c0_i32 = arith.constant 0 : i32
    %c0_i32_0 = arith.constant 0 : i32
    return %arg0, %c0_i32 : i32, i32
  }
  func.func @transform_5(%arg0: i32, %arg1: i32) -> (i32, i32) {
    %c0_i32 = arith.constant 0 : i32
    %c0_i32_0 = arith.constant 0 : i32
    return %c0_i32, %arg1 : i32, i32
  }
  func.func @transform_6(%arg0: i32, %arg1: i32) -> (i32, i32) {
    %c0_i32 = arith.constant 0 : i32
    %c0_i32_0 = arith.constant 0 : i32
    return %arg0, %c0_i32 : i32, i32
  }
}

</mosaic_0001>

<llo_original>
// kernel: tpu_custom_call.1
$region0: #{tpu_custom_call.1}
  #allocation0 [shape = 'u32[]', space=smem, size = 0x4, offset = 0x4, fixed_abs, tag = 'smem constant byte address 0x4 - core index']
  #allocation1 [shape = 'u32[144,128]{1,0:T(1,128)}', space=vmem, size = 0x12000, scoped, tag = 'internal scratch']
  #allocation2 [shape = 'f32[8,1]{1,0:T(8,128)}', space=vmem, size = 0x1000, scoped, tag = 'scratch operand']
  #allocation3 [shape = 'f32[8,1]{1,0:T(8,128)}', space=vmem, size = 0x1000, scoped, tag = 'scratch operand']
  #allocation4 [shape = 'f32[8,1]{1,0:T(8,128)}', space=vmem, size = 0x1000, scoped, tag = 'scratch operand']
  %s0 = inlined_call_operand.vmem [shape: f32[8,32], index: 0, kind: input, shape index: {}]
  %s1 = inlined_call_operand.vmem [shape: f32[32,8], index: 1, kind: input, shape index: {}]
  %s2 = inlined_call_operand.vmem [shape: f32[8,1], index: 2, kind: input, shape index: {}]
  %s3 = inlined_call_operand.vmem [shape: f32[1,8], index: 3, kind: input, shape index: {}]
  %s4 = inlined_call_operand.vmem [shape: s32[8,1], index: 4, kind: input, shape index: {}]
  %s5 = inlined_call_operand.vmem [shape: s32[1,8], index: 5, kind: input, shape index: {}]
  %s6 = inlined_call_operand.vmem [shape: f32[8,1], index: 6, kind: output, shape index: {}]
  %s7 = sld [smem:[#allocation0]]
  $region42: #{tpu_custom_call.1} parent=0
    _
  %s9 = ssub.s32 1, %s7
  %s10 = scalar_select 0, %s9, %s7
  // Predicated region
  $region2: #{tpu_custom_call.1} parent=0 // pred_check
    _
  $region3: #{tpu_custom_call.1} parent=0 // pred_check_branch
    %12 = sbr.rel (0) target = $region5
  $region4: #{tpu_custom_call.1} parent=0 // pred_region
    _
  $region5: #{tpu_custom_call.1} parent=0 // pred_fallthru
    _
  // Predicated region
  $region6: #{tpu_custom_call.1} parent=0 // pred_check
    _
  $region7: #{tpu_custom_call.1} parent=0 // pred_check_branch
    %14 = sbr.rel (0) target = $region9
  $region8: #{tpu_custom_call.1} parent=0 // pred_region
    _
  $region9: #{tpu_custom_call.1} parent=0 // pred_fallthru
    _
  // Predicated region
  $region10: #{tpu_custom_call.1} parent=0 // pred_check
    _
  $region11: #{tpu_custom_call.1} parent=0 // pred_check_branch
    %16 = sbr.rel (0) target = $region13
  $region12: #{tpu_custom_call.1} parent=0 // pred_region
    _
  $region13: #{tpu_custom_call.1} parent=0 // pred_fallthru
    _
  // Predicated region
  $region14: #{tpu_custom_call.1} parent=0 // pred_check
    _
  $region15: #{tpu_custom_call.1} parent=0 // pred_check_branch
    %18 = sbr.rel (0) target = $region17
  $region16: #{tpu_custom_call.1} parent=0 // pred_region
    _
  $region17: #{tpu_custom_call.1} parent=0 // pred_fallthru
    _
  // Predicated region
  $region18: #{tpu_custom_call.1} parent=0 // pred_check
    _
  $region19: #{tpu_custom_call.1} parent=0 // pred_check_branch
    %20 = sbr.rel (0) target = $region21
  $region20: #{tpu_custom_call.1} parent=0 // pred_region
    _
  $region21: #{tpu_custom_call.1} parent=0 // pred_fallthru
    _
  // Predicated region
  $region22: #{tpu_custom_call.1} parent=0 // pred_check
    _
  $region23: #{tpu_custom_call.1} parent=0 // pred_check_branch
    %22 = sbr.rel (0) target = $region25
  $region24: #{tpu_custom_call.1} parent=0 // pred_region
    _
  $region25: #{tpu_custom_call.1} parent=0 // pred_fallthru
    _
  %v23 = vld [vmem:[%s0] sm:$0xff]
  %v24 = vld [vmem:[%s1] sm:$0xff]
  %v25 = vld [vmem:[%s1 + $0x8] sm:$0xff]
  %v26 = vld [vmem:[%s1 + $0x10] sm:$0xff]
  %v27 = vld [vmem:[%s1 + $0x18] sm:$0xff]
  %vm28 = vcmask 261120
  %v30 = vsel %vm28, %v23, 0
  %32 = vmatprep.subr.mxu0 0.0
  %33 = vmatpush1.msra.mxu0 %v24
  %34 = vmatprep.subr.mxu0 0.0
  %35 = vmatpush1.msra.mxu0 %v25
  %36 = vmatprep.subr.mxu0 0.0
  %37 = vmatpush1.msra.mxu0 %v26
  %38 = vmatprep.subr.mxu0 0.0
  %39 = vmatpush1.msra.mxu0 %v27
  %40 = vmatprep.subr.mxu0 0.0
  %41 = vmatpush1.msra.mxu0 0.0
  %42 = vmatprep.subr.mxu0 0.0
  %43 = vmatpush1.msra.mxu0 0.0
  %44 = vmatprep.subr.mxu0 0.0
  %45 = vmatpush1.msra.mxu0 0.0
  %46 = vmatprep.subr.mxu0 0.0
  %47 = vmatpush1.msra.mxu0 0.0
  %48 = vmatprep.subr.mxu0 0.0
  %49 = vmatpush1.msra.mxu0 0.0
  %50 = vmatprep.subr.mxu0 0.0
  %51 = vmatpush1.msra.mxu0 0.0
  %52 = vmatprep.subr.mxu0 0.0
  %53 = vmatpush1.msra.mxu0 0.0
  %54 = vmatprep.subr.mxu0 0.0
  %55 = vmatpush1.msra.mxu0 0.0
  %56 = vmatprep.subr.mxu0 0.0
  %57 = vmatpush1.msra.mxu0 0.0
  %58 = vmatprep.subr.mxu0 0.0
  %59 = vmatpush1.msra.mxu0 0.0
  %60 = vmatprep.subr.mxu0 0.0
  %61 = vmatpush1.msra.mxu0 0.0
  %62 = vmatprep.subr.mxu0 0.0
  %63 = vmatpush1.msra.mxu0 0.0
  %64 = vmatprep.subr.mxu0 0.0
  %65 = vmatpush1.msra.mxu0 0.0
  %66 = vmatprep.subr.mxu0 0.0
  %67 = vmatpush1.msra.mxu0 0.0
  %68 = vmatprep.subr.mxu0 0.0
  %69 = vmatpush1.msra.mxu0 0.0
  %70 = vmatprep.subr.mxu0 0.0
  %71 = vmatpush1.msra.mxu0 0.0
  %72 = vmatprep.subr.mxu0 0.0
  %73 = vmatpush1.msra.mxu0 0.0
  %74 = vmatprep.subr.mxu0 0.0
  %75 = vmatpush1.msra.mxu0 0.0
  %76 = vmatprep.subr.mxu0 0.0
  %77 = vmatpush1.msra.mxu0 0.0
  %78 = vmatprep.subr.mxu0 0.0
  %79 = vmatpush1.msra.mxu0 0.0
  %80 = vmatprep.subr.mxu0 0.0
  %81 = vmatpush1.msra.mxu0 0.0
  %82 = vmatprep.subr.mxu0 0.0
  %83 = vmatpush1.msra.mxu0 0.0
  %84 = vmatprep.subr.mxu0 0.0
  %85 = vmatpush1.msra.mxu0 0.0
  %86 = vmatprep.subr.mxu0 0.0
  %87 = vmatpush1.msra.mxu0 0.0
  %88 = vmatprep.subr.mxu0 0.0
  %89 = vmatpush1.msra.mxu0 0.0
  %90 = vmatprep.subr.mxu0 0.0
  %91 = vmatpush1.msra.mxu0 0.0
  %92 = vmatprep.subr.mxu0 0.0
  %93 = vmatpush1.msra.mxu0 0.0
  %94 = vmatprep.subr.mxu0 0.0
  %95 = vmatpush1.msra.mxu0 0.0
  %96 = vmatprep.mubr.f32.mxu0 0.0
  %97 = vmatmul.mubr.f32.gmra.mrb[0].mxu0 %v30
  %v98 = vpop.f32.mrb[0].mxu0
  %v99 = vadd.f32 0.0, %v98
  %v100 = vpop.f32.mrb[0].mxu0
  %101 = vdwg.mxu0
  %v102 = vld [vmem:[%s2] sm:$0xff]
  %v103 = vld [vmem:[%s3] sm:$0x1]
  %105 = vset.pattern.permute.xlu0 0
  %106 = vperm.xlu0 %105, %v102
  %v107 = vpop.permute.xlu0 %106
  %v110 = vlaneseq
  %v111 = vshrl.u32 %v110, 7
  %v112 = vsub.s32 0, %v111
  %v113 = vrot.slane %v103, %v112
  %v115 = vadd.f32 %v107, %v113
  %v116 = vsub.f32 %v115, %v99
  %v117 = vmax.f32 %v116, 0.0
  %v118 = vld [vmem:[%s4] sm:$0xff]
  %v119 = vld [vmem:[%s5] sm:$0x1]
  %120 = vset.pattern.permute.xlu0 0
  %121 = vperm.xlu0 %120, %v118
  %v122 = vpop.permute.xlu0 %121
  %v123 = vlaneseq
  %v124 = vshrl.u32 %v123, 7
  %v125 = vsub.s32 0, %v124
  %v126 = vrot.slane %v119, %v125
  %vm127 = vcmp.eq.s32.totalorder %v122, %v126
  %v128 = vlaneseq
  %v129 = vshrl.u32 %v128, 7
  %s130 = smul.u32 0, 8
  %s131 = smul.u32 0, 8
  %s132 = ssub.s32 %s130, %s131
  %v133 = vstv %s132
  %v134 = vadd.s32 %v129, %v133
  %v135 = vlaneseq
  %v136 = vand.u32 %v135, 127
  %vm137 = vcmp.ne.s32.totalorder %v136, %v134
  %vm138 = vmand %vm127, %vm137
  %v139 = vsel %vm138, %v117, 0.0
  %vm140 = vcmask 64512
  %v141 = vsel %vm140, %v139, -inf
  %142 = vmax.xlane.f32.xlu0 %v141
  %v143 = vpop.xlane.xlu0 %142
  %v144 = vsel %vm127, inf, %v117
  %v145 = vsel %vm140, %v144, inf
  %146 = vmin.xlane.f32.xlu0 %v145
  %v147 = vpop.xlane.xlu0 %146
  %p148 = scmp.eq.s32.totalorder 0, 0
  // Predicated region
  $region26: #{tpu_custom_call.1} parent=0 // pred_check
    %p149 = pneg %p148
  $region27: #{tpu_custom_call.1} parent=0 // pred_check_branch
    %151 = sbr.rel (%p149) target = $region29
  $region28: #{tpu_custom_call.1} parent=0 // pred_region
    %vm152 = vcmask 7168
    %153 = vst.msk [vmem:[#allocation2] sm:$0xff] %vm152, 0.0
    %154 = vst.msk [vmem:[#allocation3] sm:$0xff] %vm152, inf
    %155 = vst.msk [vmem:[#allocation4] sm:$0xff] %vm152, %v117
  $region29: #{tpu_custom_call.1} parent=0 // pred_fallthru
    _
  %v156 = vld [vmem:[#allocation2] sm:$0xff]
  %v157 = vmax.f32 %v156, %v143
  %vm158 = vcmask 7168
  %159 = vst.msk [vmem:[#allocation2] sm:$0xff] %vm158, %v157
  %v160 = vld [vmem:[#allocation3] sm:$0xff]
  %v161 = vmin.f32 %v160, %v147
  %162 = vst.msk [vmem:[#allocation3] sm:$0xff] %vm158, %v161
  // Predicated region
  $region30: #{tpu_custom_call.1} parent=0 // pred_check
    %p163 = pneg %p148
  $region31: #{tpu_custom_call.1} parent=0 // pred_check_branch
    %165 = sbr.rel (%p163) target = $region33
  $region32: #{tpu_custom_call.1} parent=0 // pred_region
    %v166 = vld [vmem:[#allocation3] sm:$0xff]
    %vm167 = vcmp.ge.f32.partialorder %v166, 1e+29
    %v168 = vld [vmem:[#allocation4] sm:$0xff]
    %v169 = vsel %vm167, %v168, %v166
    %v170 = vld [vmem:[#allocation2] sm:$0xff]
    %v171 = vrsqrt.pop %v170
    %v172 = vmul.f32 %v170, %v171
    %vm173 = vcmp.eq.f32.partialorder %v170, inf
    %v174 = vsel %vm173, %v170, %v172
    %vm175 = vcmp.eq.f32.partialorder %v170, 0.0
    %v176 = vand.u32 %v170, 2147483648
    %v177 = vsel %vm175, %v176, %v174
    %v178 = vrsqrt.pop %v169
    %v179 = vmul.f32 %v169, %v178
    %vm180 = vcmp.eq.f32.partialorder %v169, inf
    %v181 = vsel %vm180, %v169, %v179
    %vm182 = vcmp.eq.f32.partialorder %v169, 0.0
    %v183 = vand.u32 %v169, 2147483648
    %v184 = vsel %vm182, %v183, %v181
    %v185 = vsub.f32 %v177, %v184
    %v186 = vmul.f32 %v185, 1.4142135
    %v187 = vmax.f32 %v186, 0.0
    %v188 = vand.u32 2147483647, %v186
    %v189 = vsub.f32 0.0, %v188
    %v190 = vmul.f32 %v189, 1.442695
    %v191 = vpow.pop %v190
    %v192 = vadd.f32 %v191, 1.0
    %v193 = vlog2.pop %v192
    %v194 = vmul.f32 %v193, 0.6931472
    %v195 = vmul.f32 -0.5, %v191
    %v196 = vadd.f32 %v195, 1.0
    %v197 = vmul.f32 %v196, %v191
    %v198 = vand.u32 2147483647, %v191
    %vm199 = vcmp.lt.f32.partialorder %v198, 0.0004427343
    %v200 = vsel %vm199, %v197, %v194
    %v201 = vadd.f32 %v187, %v200
    %202 = vst.msk [vmem:[%s6] sm:$0xff] %vm158, %v201
  $region33: #{tpu_custom_call.1} parent=0 // pred_fallthru
    _
  // Predicated region
  $region34: #{tpu_custom_call.1} parent=0 // pred_check
    _
  $region35: #{tpu_custom_call.1} parent=0 // pred_check_branch
    %204 = sbr.rel (0) target = $region37
  $region36: #{tpu_custom_call.1} parent=0 // pred_region
    _
  $region37: #{tpu_custom_call.1} parent=0 // pred_fallthru
    _
  // Predicated region
  $region38: #{tpu_custom_call.1} parent=0 // pred_check
    _
  $region39: #{tpu_custom_call.1} parent=0 // pred_check_branch
    %206 = sbr.rel (0) target = $region41
  $region40: #{tpu_custom_call.1} parent=0 // pred_region
    _
  $region41: #{tpu_custom_call.1} parent=0 // pred_fallthru
    _

</llo_original>
